<compile_context>
chip_gen: v7x
topology: tpu7x:2x2x1
jax: 0.10.0
libtpu: 0.0.40
codegen_flags: <defaults>
</compile_context>

<pallas_src>
import functools

import numpy as np
import jax
import jax.numpy as jnp
from jax.experimental import pallas as pl
from jax.experimental.pallas import tpu as pltpu


# ----------------------------------------------------------------------------
# Pallas kernels: tiled matmul with fused bias (+ optional residual) + ReLU
# ----------------------------------------------------------------------------

def _mm_bias_kernel(a_ref, b_ref, t_ref, o_ref, acc_ref, *, relu):
    k = pl.program_id(2)

    @pl.when(k == 0)
    def _():
        acc_ref[...] = jnp.zeros_like(acc_ref)

    acc_ref[...] += jnp.dot(a_ref[...], b_ref[...],
                            preferred_element_type=jnp.float32)

    @pl.when(k == pl.num_programs(2) - 1)
    def _():
        y = acc_ref[...] + t_ref[...]
        if relu:
            y = jnp.maximum(y, 0.0)
        o_ref[...] = y.astype(o_ref.dtype)


def _mm_bias_res_kernel(a_ref, b_ref, t_ref, r_ref, o_ref, acc_ref, *, relu):
    k = pl.program_id(2)

    @pl.when(k == 0)
    def _():
        acc_ref[...] = jnp.zeros_like(acc_ref)

    acc_ref[...] += jnp.dot(a_ref[...], b_ref[...],
                            preferred_element_type=jnp.float32)

    @pl.when(k == pl.num_programs(2) - 1)
    def _():
        y = acc_ref[...] + t_ref[...] + r_ref[...].astype(jnp.float32)
        if relu:
            y = jnp.maximum(y, 0.0)
        o_ref[...] = y.astype(o_ref.dtype)


def _round_up(x, m):
    return (x + m - 1) // m * m


def _pick_tile(padded, candidates):
    for c in candidates:
        if padded % c == 0:
            return c
    return padded


def _matmul_bias_act(a, b_scaled, shift, residual, relu, out_dtype):
    """out = [relu]((a @ b_scaled) + shift [+ residual]).

    a: (M, K), b_scaled: (K, N) with BN scale folded in, shift: (N,).
    MXU runs in bf16 with fp32 accumulation; epilogue in fp32.
    """
    M, K = a.shape
    _, N = b_scaled.shape

    # M tiling: bounded VMEM, lots of parallel grid work for megacore.
    if M > 256:
        tm = 256
        Mp = _round_up(M, tm)
    else:
        Mp = _round_up(max(M, 16), 16)   # bf16 sublane packing: multiple of 16
        tm = Mp
    Kp = _round_up(K, 128)
    Np = _round_up(N, 128)
    tk = _pick_tile(Kp, (512, 384, 256, 128))
    tn = _pick_tile(Np, (256, 128))

    a_p = jnp.pad(a.astype(jnp.bfloat16), ((0, Mp - M), (0, Kp - K)))
    b_p = jnp.pad(b_scaled.astype(jnp.bfloat16), ((0, Kp - K), (0, Np - N)))
    t_p = jnp.pad(shift.astype(jnp.float32).reshape(1, N),
                  ((0, 0), (0, Np - N)))

    in_specs = [
        pl.BlockSpec((tm, tk), lambda i, j, k: (i, k)),
        pl.BlockSpec((tk, tn), lambda i, j, k: (k, j)),
        pl.BlockSpec((1, tn), lambda i, j, k: (0, j)),
    ]
    args = [a_p, b_p, t_p]
    bytes_accessed = (Mp * Kp + Kp * Np) * 2 + Mp * Np * jnp.dtype(out_dtype).itemsize
    if residual is not None:
        r_p = jnp.pad(residual.astype(jnp.bfloat16), ((0, Mp - M), (0, Np - N)))
        in_specs.append(pl.BlockSpec((tm, tn), lambda i, j, k: (i, j)))
        args.append(r_p)
        bytes_accessed += Mp * Np * 2
        kernel = functools.partial(_mm_bias_res_kernel, relu=relu)
    else:
        kernel = functools.partial(_mm_bias_kernel, relu=relu)

    cost = pl.CostEstimate(flops=2 * Mp * Kp * Np, transcendentals=0,
                           bytes_accessed=int(bytes_accessed))

    out = pl.pallas_call(
        kernel,
        out_shape=jax.ShapeDtypeStruct((Mp, Np), out_dtype),
        grid_spec=pltpu.PrefetchScalarGridSpec(
            num_scalar_prefetch=0,
            grid=(Mp // tm, Np // tn, Kp // tk),
            in_specs=in_specs,
            out_specs=pl.BlockSpec((tm, tn), lambda i, j, k: (i, j)),
            scratch_shapes=[pltpu.VMEM((tm, tn), jnp.float32)],
        ),
        compiler_params=pltpu.CompilerParams(
            dimension_semantics=("parallel", "parallel", "arbitrary")),
        cost_estimate=cost,
    )(*args)
    return out[:M, :N]


# ----------------------------------------------------------------------------
# Conv2d (+BN, +optional residual, +optional ReLU) via im2col + Pallas matmul
# ----------------------------------------------------------------------------

def _im2col_nhwc(x, kh, kw, stride, padding, dilation):
    """x: (N, H, W, C) -> A: (N*OH*OW, KH*KW*C) with (kh, kw, c) column order."""
    N, H, W, C = x.shape
    if kh == 1 and kw == 1 and padding == 0:
        if stride != 1:
            x = x[:, ::stride, ::stride, :]
        oh, ow = x.shape[1], x.shape[2]
        return x.reshape(N * oh * ow, C), oh, ow
    xp = jnp.pad(x, ((0, 0), (padding, padding), (padding, padding), (0, 0)))
    oh = (H + 2 * padding - dilation * (kh - 1) - 1) // stride + 1
    ow = (W + 2 * padding - dilation * (kw - 1) - 1) // stride + 1
    cols = []
    for i in range(kh):
        for j in range(kw):
            hi, wi = i * dilation, j * dilation
            patch = xp[:,
                       hi:hi + stride * (oh - 1) + 1:stride,
                       wi:wi + stride * (ow - 1) + 1:stride, :]
            cols.append(patch)                      # (N, oh, ow, C)
    stacked = jnp.stack(cols, axis=3)               # (N, oh, ow, kh*kw, C)
    return stacked.reshape(N * oh * ow, kh * kw * C), oh, ow


def _conv_impl(x, w, scale, shift, residual, stride, padding, dilation, relu,
               out_dtype):
    n = x.shape[0]
    cout, cin, kh, kw = w.shape
    a, oh, ow = _im2col_nhwc(x, kh, kw, stride, padding, dilation)
    # (kh, kw, cin, cout) flatten -> matches im2col column order; fold BN scale.
    b = w.transpose(2, 3, 1, 0).reshape(kh * kw * cin, cout) * scale[None, :]
    res = residual.reshape(n * oh * ow, cout) if residual is not None else None
    y = _matmul_bias_act(a, b, shift, res, relu, out_dtype)
    return y.reshape(n, oh, ow, cout)


@functools.partial(jax.jit, static_argnames=("stride", "padding", "dilation",
                                             "relu", "out_dtype"))
def conv_bn_act(x, w, scale, shift, *, stride=1, padding=0, dilation=1,
                relu=True, out_dtype=jnp.bfloat16):
    return _conv_impl(x, w, scale, shift, None, stride, padding, dilation,
                      relu, out_dtype)


@functools.partial(jax.jit, static_argnames=("stride", "padding", "dilation",
                                             "relu", "out_dtype"))
def conv_bn_act_res(x, w, scale, shift, residual, *, stride=1, padding=0,
                    dilation=1, relu=True, out_dtype=jnp.bfloat16):
    return _conv_impl(x, w, scale, shift, residual, stride, padding, dilation,
                      relu, out_dtype)


# ----------------------------------------------------------------------------
# Small glue ops (plain JAX, NHWC): maxpool, adaptive avg pool, bilinear resize
# ----------------------------------------------------------------------------

def maxpool_3x3_s2_p1(x):
    N, H, W, C = x.shape
    xp = jnp.pad(x, ((0, 0), (1, 1), (1, 1), (0, 0)),
                 constant_values=-jnp.inf)
    oh = (H + 2 - 3) // 2 + 1
    ow = (W + 2 - 3) // 2 + 1
    out = jnp.full((N, oh, ow, C), -jnp.inf, x.dtype)
    for i in range(3):
        for j in range(3):
            out = jnp.maximum(out, xp[:,
                                      i:i + 2 * (oh - 1) + 1:2,
                                      j:j + 2 * (ow - 1) + 1:2, :])
    return out


def _adaptive_pool_matrix(in_size, out_size):
    mat = np.zeros((out_size, in_size), np.float32)
    for i in range(out_size):
        s = (i * in_size) // out_size
        e = -((-(i + 1) * in_size) // out_size)
        mat[i, s:e] = 1.0 / (e - s)
    return jnp.asarray(mat)


def adaptive_avg_pool2d(x, out_size):
    _, H, W, _ = x.shape
    Ph = _adaptive_pool_matrix(H, out_size)
    Pw = _adaptive_pool_matrix(W, out_size)
    y = jnp.einsum('oh,nhwc,pw->nopc', Ph, x.astype(jnp.float32), Pw)
    return y.astype(x.dtype)


def _interp_matrix(in_size, out_size):
    if out_size == 1:
        src = np.zeros((1,))
    else:
        src = np.arange(out_size) * (in_size - 1) / (out_size - 1)
    lo = np.floor(src).astype(np.int64)
    lo = np.clip(lo, 0, in_size - 1)
    hi = np.minimum(lo + 1, in_size - 1)
    w_hi = (src - lo).astype(np.float32)
    w_lo = 1.0 - w_hi
    mat = np.zeros((out_size, in_size), np.float32)
    mat[np.arange(out_size), lo] += w_lo
    mat[np.arange(out_size), hi] += w_hi
    return jnp.asarray(mat)


def bilinear_resize_align_corners(x, out_h, out_w, out_dtype=None):
    _, H, W, _ = x.shape
    Mh = _interp_matrix(H, out_h)
    Mw = _interp_matrix(W, out_w)
    y = jnp.einsum('oh,nhwc,pw->nopc', Mh, x.astype(jnp.float32), Mw)
    return y.astype(out_dtype if out_dtype is not None else x.dtype)


# ----------------------------------------------------------------------------
# Parameter init (deterministic, synthetic)
# ----------------------------------------------------------------------------

def _init_conv_bn(key, cin, cout, k):
    k1, k2, k3, k4, k5 = jax.random.split(key, 5)
    fan_in = cin * k * k
    w = jax.random.normal(k1, (cout, cin, k, k), jnp.float32) * np.sqrt(2.0 / fan_in)
    gamma = 1.0 + 0.05 * jax.random.normal(k2, (cout,), jnp.float32)
    beta = 0.05 * jax.random.normal(k3, (cout,), jnp.float32)
    r_mean = 0.05 * jax.random.normal(k4, (cout,), jnp.float32)
    r_var = 1.0 + 0.1 * jax.random.uniform(k5, (cout,), jnp.float32)
    eps = 1e-5
    scale = gamma / jnp.sqrt(r_var + eps)
    shift = beta - r_mean * scale
    return {"w": w, "scale": scale, "shift": shift}


def _init_conv_bias(key, cin, cout, k):
    k1, k2 = jax.random.split(key, 2)
    fan_in = cin * k * k
    w = jax.random.normal(k1, (cout, cin, k, k), jnp.float32) * np.sqrt(1.0 / fan_in)
    b = 0.05 * jax.random.normal(k2, (cout,), jnp.float32)
    return {"w": w, "scale": jnp.ones((cout,), jnp.float32), "shift": b}


def init_pspnet_params(key, n_classes):
    keys = iter(jax.random.split(key, 256))
    nk = lambda: next(keys)

    def residual_block(n_blocks, cin, mid, cout):
        blk = {
            "block1": {
                "cbr_1": _init_conv_bn(nk(), cin, mid, 1),
                "cbr_2": _init_conv_bn(nk(), mid, mid, 3),
                "cb_3": _init_conv_bn(nk(), mid, cout, 1),
                "cb_residual": _init_conv_bn(nk(), cin, cout, 1),
            },
            "identity_blocks": [],
        }
        for _ in range(n_blocks - 1):
            blk["identity_blocks"].append({
                "cbr_1": _init_conv_bn(nk(), cout, mid, 1),
                "cbr_2": _init_conv_bn(nk(), mid, mid, 3),
                "cb_3": _init_conv_bn(nk(), mid, cout, 1),
            })
        return blk

    params = {
        "feature_conv": {
            "cbnr_1": _init_conv_bn(nk(), 3, 64, 3),
            "cbnr_2": _init_conv_bn(nk(), 64, 64, 3),
            "cbnr_3": _init_conv_bn(nk(), 64, 128, 3),
        },
        "feature_res_1": residual_block(3, 128, 64, 256),
        "feature_res_2": residual_block(4, 256, 128, 512),
        "feature_dilated_res_1": residual_block(6, 512, 256, 1024),
        "feature_dilated_res_2": residual_block(3, 1024, 512, 2048),
        "pyramid_pooling": {
            "cbr_1": _init_conv_bn(nk(), 2048, 512, 1),
            "cbr_2": _init_conv_bn(nk(), 2048, 512, 1),
            "cbr_3": _init_conv_bn(nk(), 2048, 512, 1),
            "cbr_4": _init_conv_bn(nk(), 2048, 512, 1),
        },
        "decode_feature": {
            "cbr": _init_conv_bn(nk(), 4096, 512, 3),
            "classification": _init_conv_bias(nk(), 512, n_classes, 1),
        },
        "aux": {
            "cbr": _init_conv_bn(nk(), 1024, 256, 3),
            "classification": _init_conv_bias(nk(), 256, n_classes, 1),
        },
    }
    return params


# ----------------------------------------------------------------------------
# Module forwards (NHWC activations)
# ----------------------------------------------------------------------------

def cbr(p, x, stride=1, padding=0, dilation=1, relu=True,
        out_dtype=jnp.bfloat16):
    return conv_bn_act(x, p["w"], p["scale"], p["shift"],
                       stride=stride, padding=padding, dilation=dilation,
                       relu=relu, out_dtype=out_dtype)


def feature_map_convolution(p, x):
    x = cbr(p["cbnr_1"], x, stride=2, padding=1)
    x = cbr(p["cbnr_2"], x, stride=1, padding=1)
    x = cbr(p["cbnr_3"], x, stride=1, padding=1)
    return maxpool_3x3_s2_p1(x)


def bottleneck_psp(p, x, stride, dilation):
    h = cbr(p["cbr_1"], x)
    h = cbr(p["cbr_2"], h, stride=stride, padding=dilation, dilation=dilation)
    residual = cbr(p["cb_residual"], x, stride=stride, relu=False)
    # relu(Conv2dBatchNorm(h) + residual), fused into the kernel epilogue.
    return conv_bn_act_res(h, p["cb_3"]["w"], p["cb_3"]["scale"],
                           p["cb_3"]["shift"], residual, relu=True)


def bottleneck_identify_psp(p, x, dilation):
    h = cbr(p["cbr_1"], x)
    h = cbr(p["cbr_2"], h, stride=1, padding=dilation, dilation=dilation)
    return conv_bn_act_res(h, p["cb_3"]["w"], p["cb_3"]["scale"],
                           p["cb_3"]["shift"], x, relu=True)


def residual_block_psp(p, x, stride, dilation):
    x = bottleneck_psp(p["block1"], x, stride, dilation)
    for blk in p["identity_blocks"]:
        x = bottleneck_identify_psp(blk, x, dilation)
    return x


def pyramid_pooling(p, x, pool_sizes, height, width):
    outs = [x]
    for i, ps in enumerate(pool_sizes):
        h = adaptive_avg_pool2d(x, ps)
        h = cbr(p["cbr_%d" % (i + 1)], h)
        h = bilinear_resize_align_corners(h, height, width)
        outs.append(h)
    return jnp.concatenate(outs, axis=-1)


def decode_psp_feature(p, x, height, width):
    x = cbr(p["cbr"], x, stride=1, padding=1)
    # Dropout2d(p=0.1): identity in eval mode
    x = cbr(p["classification"], x, relu=False, out_dtype=jnp.float32)
    return bilinear_resize_align_corners(x, height, width, jnp.float32)


def auxiliary_psp_layers(p, x, height, width):
    x = cbr(p["cbr"], x, stride=1, padding=1)
    # Dropout2d(p=0.1): identity in eval mode
    x = cbr(p["classification"], x, relu=False, out_dtype=jnp.float32)
    return bilinear_resize_align_corners(x, height, width, jnp.float32)


def pspnet_forward(params, x_nchw, img_size, img_size_8):
    x = jnp.transpose(x_nchw, (0, 2, 3, 1))   # NCHW -> NHWC (once, at boundary)
    x = feature_map_convolution(params["feature_conv"], x)
    x = residual_block_psp(params["feature_res_1"], x, stride=1, dilation=1)
    x = residual_block_psp(params["feature_res_2"], x, stride=2, dilation=1)
    x = residual_block_psp(params["feature_dilated_res_1"], x, stride=1, dilation=2)
    output_aux = auxiliary_psp_layers(params["aux"], x, img_size, img_size)
    x = residual_block_psp(params["feature_dilated_res_2"], x, stride=1, dilation=4)
    x = pyramid_pooling(params["pyramid_pooling"], x, (6, 3, 2, 1),
                        img_size_8, img_size_8)
    output = decode_psp_feature(params["decode_feature"], x, img_size, img_size)
    # Back to NCHW to match PyTorch outputs.
    return (jnp.transpose(output, (0, 3, 1, 2)),
            jnp.transpose(output_aux, (0, 3, 1, 2)))


# ----------------------------------------------------------------------------
# Main
# ----------------------------------------------------------------------------

if __name__ == "__main__":
    # Same architecture/channel widths as the reference PSPNet (block_config
    # [3,4,6,3], channels 3->64->128->...->2048->4096); spatial sizes scaled
    # down (original: img_size=475, img_size_8=60) for a fast synthetic test.
    n_classes = 21
    img_size = 65      # input spatial size; feature map after /8 stages = 9
    img_size_8 = 9

    key = jax.random.PRNGKey(0)
    pkey, xkey = jax.random.split(key)
    params = init_pspnet_params(pkey, n_classes)
    x = jax.random.normal(xkey, (2, 3, img_size, img_size), jnp.float32)

    out, out_aux = pspnet_forward(params, x, img_size, img_size_8)
    out = jax.block_until_ready(out)
    out_aux = jax.block_until_ready(out_aux)

    assert out.shape == (2, n_classes, img_size, img_size), out.shape
    assert out_aux.shape == (2, n_classes, img_size, img_size), out_aux.shape
    assert bool(jnp.all(jnp.isfinite(out))) and bool(jnp.all(jnp.isfinite(out_aux)))
    print("KERNEL_OK")
</pallas_src>

<mosaic_0001>
module attributes {stable_mosaic.version = 11 : i64} {
  func.func @_mm_bias_kernel(%arg0: i32, %arg1: i32, %arg2: i32, %arg3: memref<256x128xbf16, #tpu.memory_space<vmem>>, %arg4: memref<128x128xbf16, #tpu.memory_space<vmem>>, %arg5: memref<1x128xf32, #tpu.memory_space<vmem>>, %arg6: memref<256x128xbf16, #tpu.memory_space<vmem>>, %arg7: memref<256x128xf32, #tpu.memory_space<vmem>>) attributes {dimension_semantics = [#tpu.dimension_semantics<parallel>, #tpu.dimension_semantics<parallel>, #tpu.dimension_semantics<arbitrary>], iteration_bounds = array<i64: 9, 1, 1>, scalar_prefetch = 0 : i64, scratch_operands = 1 : i64, tpu.core_type = #tpu.core_type<tc>, window_params = [{transform_indices = @transform_0, window_bounds = array<i64: 256, 128>}, {transform_indices = @transform_1, window_bounds = array<i64: 128, 128>}, {transform_indices = @transform_2, window_bounds = array<i64: 1, 128>}, {transform_indices = @transform_3, window_bounds = array<i64: 256, 128>}]} {
    %c0_i32 = arith.constant 0 : i32
    %0 = arith.cmpi eq, %arg2, %c0_i32 : i32
    %1 = arith.extui %0 : i1 to i32
    %c0_i32_0 = arith.constant 0 : i32
    %2 = arith.cmpi ne, %1, %c0_i32_0 : i32
    scf.if %2 {
      %cst_10 = arith.constant 0.000000e+00 : f32
      %12 = vector.broadcast %cst_10 : f32 to vector<256x128xf32>
      %c0_11 = arith.constant 0 : index
      %c0_12 = arith.constant 0 : index
      %13 = vector.load %arg7[%c0_11, %c0_12] : memref<256x128xf32, #tpu.memory_space<vmem>>, vector<256x128xf32>
      tpu.vector_store %arg7[%c0_11, %c0_12], %12 {strides = array<i32>} : memref<256x128xf32, #tpu.memory_space<vmem>>, vector<256x128xf32>,
    } else {
    }
    %c0 = arith.constant 0 : index
    %c0_1 = arith.constant 0 : index
    %3 = vector.load %arg7[%c0, %c0_1] : memref<256x128xf32, #tpu.memory_space<vmem>>, vector<256x128xf32>
    %c0_2 = arith.constant 0 : index
    %c0_3 = arith.constant 0 : index
    %4 = vector.load %arg3[%c0_2, %c0_3] : memref<256x128xbf16, #tpu.memory_space<vmem>>, vector<256x128xbf16>
    %c0_4 = arith.constant 0 : index
    %c0_5 = arith.constant 0 : index
    %5 = vector.load %arg4[%c0_4, %c0_5] : memref<128x128xbf16, #tpu.memory_space<vmem>>, vector<128x128xbf16>
    %cst = arith.constant dense<0.000000e+00> : vector<256x128xf32>
    %6 = tpu.matmul %4, %5, %cst {dimension_numbers = #tpu.dot_dimension_numbers<[1], [0], [0], [1], [0, 0, 1, 1], [], []>} : vector<256x128xbf16>, vector<128x128xbf16>, vector<256x128xf32> -> vector<256x128xf32>
    %7 = arith.addf %3, %6 : vector<256x128xf32>
    %c0_6 = arith.constant 0 : index
    %c0_7 = arith.constant 0 : index
    %8 = vector.load %arg7[%c0_6, %c0_7] : memref<256x128xf32, #tpu.memory_space<vmem>>, vector<256x128xf32>
    tpu.vector_store %arg7[%c0_6, %c0_7], %7 {strides = array<i32>} : memref<256x128xf32, #tpu.memory_space<vmem>>, vector<256x128xf32>,
    %c0_i32_8 = arith.constant 0 : i32
    %9 = arith.cmpi eq, %arg2, %c0_i32_8 : i32
    %10 = arith.extui %9 : i1 to i32
    %c0_i32_9 = arith.constant 0 : i32
    %11 = arith.cmpi ne, %10, %c0_i32_9 : i32
    scf.if %11 {
      %c0_10 = arith.constant 0 : index
      %c0_11 = arith.constant 0 : index
      %12 = vector.load %arg7[%c0_10, %c0_11] : memref<256x128xf32, #tpu.memory_space<vmem>>, vector<256x128xf32>
      %c0_12 = arith.constant 0 : index
      %c0_13 = arith.constant 0 : index
      %13 = vector.load %arg5[%c0_12, %c0_13] : memref<1x128xf32, #tpu.memory_space<vmem>>, vector<1x128xf32>
      %14 = vector.broadcast %13 : vector<1x128xf32> to vector<256x128xf32>
      %15 = arith.addf %12, %14 : vector<256x128xf32>
      %cst_14 = arith.constant 0.000000e+00 : f32
      %16 = vector.broadcast %cst_14 : f32 to vector<256x128xf32>
      %17 = arith.maximumf %15, %16 : vector<256x128xf32>
      %18 = arith.truncf %17 : vector<256x128xf32> to vector<256x128xbf16>
      %c0_15 = arith.constant 0 : index
      %c0_16 = arith.constant 0 : index
      %19 = vector.load %arg6[%c0_15, %c0_16] : memref<256x128xbf16, #tpu.memory_space<vmem>>, vector<256x128xbf16>
      tpu.vector_store %arg6[%c0_15, %c0_16], %18 {strides = array<i32>} : memref<256x128xbf16, #tpu.memory_space<vmem>>, vector<256x128xbf16>,
    } else {
    }
    return
  }
  func.func @transform_0(%arg0: i32, %arg1: i32, %arg2: i32) -> (i32, i32) {
    %c0_i32 = arith.constant 0 : i32
    return %arg0, %arg2 : i32, i32
  }
  func.func @transform_1(%arg0: i32, %arg1: i32, %arg2: i32) -> (i32, i32) {
    %c0_i32 = arith.constant 0 : i32
    return %arg2, %arg1 : i32, i32
  }
  func.func @transform_2(%arg0: i32, %arg1: i32, %arg2: i32) -> (i32, i32) {
    %c0_i32 = arith.constant 0 : i32
    %c0_i32_0 = arith.constant 0 : i32
    return %c0_i32, %arg1 : i32, i32
  }
  func.func @transform_3(%arg0: i32, %arg1: i32, %arg2: i32) -> (i32, i32) {
    %c0_i32 = arith.constant 0 : i32
    return %arg0, %arg1 : i32, i32
  }
}

</mosaic_0001>

<llo_original>
// kernel: conv_bn_act.1
$region0: #{conv_bn_act.1}
  #allocation0 [shape = 'u32[]', space=smem, size = 0x4, offset = 0x4, fixed_abs, tag = 'smem constant byte address 0x4 - core index']
  #allocation1 [shape = 'u32[144,128]{1,0:T(1,128)}', space=vmem, size = 0x12000, scoped, tag = 'internal scratch']
  #allocation2 [shape = 'f32[256,128]{1,0:T(8,128)}', space=vmem, size = 0x20000, scoped, tag = 'scratch operand']
  %s0 = inlined_call_operand.vmem [shape: bf16[2304,128], index: 0, kind: input, shape index: {}]
  %s1 = inlined_call_operand.vmem [shape: bf16[128,128], index: 1, kind: input, shape index: {}]
  %s2 = inlined_call_operand.vmem [shape: f32[1,128], index: 2, kind: input, shape index: {}]
  %s3 = inlined_call_operand.vmem [shape: bf16[2304,128], index: 3, kind: output, shape index: {}]
  %s4 = sld [smem:[#allocation0]]
  $region53: #{conv_bn_act.1} parent=0
    _
  %s6 = ssub.s32 1, %s4
  %s7 = scalar_select 0, %s6, %s4
  loop: start=0, step=1, limit=11
  $region2: #{conv_bn_act.1} parent=0 // loop_pre_header
    _
  $region3: #{conv_bn_act.1} parent=0 // loop_header
    %s9 = sphi 0, %s13
    %p10 = scmp.ge.s32.totalorder %s9, 11
    %s16 = sphi 0, %s35
    %s17 = sphi 0, %s31
    %s18 = sphi 0, %s27
    %s19 = sphi 0, %s16
    %s20 = sphi 0, %s17
    %s21 = sphi 0, %s18
    %s22 = sphi 0, %s19
    %s23 = sphi 0, %s20
    %s24 = sphi 0, %s21
    %s40 = sphi 0, %s42
    %s43 = sphi 0, %s40
    %s44 = sphi 0, %s43
    %s60 = sphi 0, %s44
    %s68 = sphi 0, %s70
    %s71 = sphi 0, %s68
    %s72 = sphi 0, %s71
    %s88 = sphi 0, %s72
    %s94 = sphi 0, %s96
    %s97 = sphi 0, %s94
    %s98 = sphi 0, %s97
    %s114 = sphi 0, %s98
    %s122 = sphi 0, %s124
    %s125 = sphi 0, %s122
    %s126 = sphi 0, %s125
    %s142 = sphi 0, %s126
  $region4: #{conv_bn_act.1} parent=0 // loop_header_branch
    %12 = sbr.rel (%p10) target = $region8
  $region5: #{conv_bn_act.1} parent=0 // loop_body
    %s14 = ssub.s32 %s9, 1
    %s15 = ssub.s32 %s9, 2
    %s25 = sadd.s32 1, %s18
    %p26 = scmp.ge.s32.totalorder %s25, 1
    %s27 = scalar_select %p26, 0, %s25
    %s28 = sadd.s32 1, %s17
    %s29 = scalar_select %p26, %s28, %s17
    %p30 = scmp.ge.s32.totalorder %s29, 1
    %s31 = scalar_select %p30, 0, %s29
    %s32 = sadd.s32 1, %s16
    %s33 = scalar_select %p30, %s32, %s16
    %p34 = scmp.ge.s32.totalorder %s33, 9
    %s35 = scalar_select %p34, 0, %s33
    %s36 = ssub.s32 %s16, %s35
    %s37 = ssub.s32 %s18, %s27
    %s38 = sor.u32 %s36, %s37
    %p39 = scmp.eq.s32.totalorder %s38, 0
    %s41 = sadd.s32 %s40, 1
    %s42 = scalar_select %p39, %s40, %s41
    %p45 = pneg %p39
    %p46 = scmp.eq.s32.totalorder %s9, 8
    %p47 = por %p45, %p46
    %p48 = scmp.ne.s32.totalorder %s40, %s43
    %p49 = scmp.eq.s32.totalorder %s9, 0
    %p50 = por %p48, %p49
    %p51 = scmp.ne.s32.totalorder %s40, %s43
    %p52 = scmp.eq.s32.totalorder %s14, 8
    %p53 = por %p51, %p52
    %p54 = scmp.ne.s32.totalorder %s43, %s44
    %p55 = scmp.eq.s32.totalorder %s14, 0
    %p56 = por %p54, %p55
    %p57 = scmp.ne.s32.totalorder %s43, %s44
    %p58 = scmp.eq.s32.totalorder %s15, 8
    %p59 = por %p57, %p58
    %p61 = scmp.ne.s32.totalorder %s44, %s60
    %p62 = scmp.eq.s32.totalorder %s15, 0
    %p63 = por %p61, %p62
    %s64 = ssub.s32 %s18, %s27
    %s65 = ssub.s32 %s17, %s31
    %s66 = sor.u32 %s64, %s65
    %p67 = scmp.eq.s32.totalorder %s66, 0
    %s69 = sadd.s32 %s68, 1
    %s70 = scalar_select %p67, %s68, %s69
    %p73 = pneg %p67
    %p74 = scmp.eq.s32.totalorder %s9, 8
    %p75 = por %p73, %p74
    %p76 = scmp.ne.s32.totalorder %s68, %s71
    %p77 = scmp.eq.s32.totalorder %s9, 0
    %p78 = por %p76, %p77
    %p79 = scmp.ne.s32.totalorder %s68, %s71
    %p80 = scmp.eq.s32.totalorder %s14, 8
    %p81 = por %p79, %p80
    %p82 = scmp.ne.s32.totalorder %s71, %s72
    %p83 = scmp.eq.s32.totalorder %s14, 0
    %p84 = por %p82, %p83
    %p85 = scmp.ne.s32.totalorder %s71, %s72
    %p86 = scmp.eq.s32.totalorder %s15, 8
    %p87 = por %p85, %p86
    %p89 = scmp.ne.s32.totalorder %s72, %s88
    %p90 = scmp.eq.s32.totalorder %s15, 0
    %p91 = por %p89, %p90
    %s92 = ssub.s32 %s17, %s31
    %p93 = scmp.eq.s32.totalorder %s92, 0
    %s95 = sadd.s32 %s94, 1
    %s96 = scalar_select %p93, %s94, %s95
    %p99 = pneg %p93
    %p100 = scmp.eq.s32.totalorder %s9, 8
    %p101 = por %p99, %p100
    %p102 = scmp.ne.s32.totalorder %s94, %s97
    %p103 = scmp.eq.s32.totalorder %s9, 0
    %p104 = por %p102, %p103
    %p105 = scmp.ne.s32.totalorder %s94, %s97
    %p106 = scmp.eq.s32.totalorder %s14, 8
    %p107 = por %p105, %p106
    %p108 = scmp.ne.s32.totalorder %s97, %s98
    %p109 = scmp.eq.s32.totalorder %s14, 0
    %p110 = por %p108, %p109
    %p111 = scmp.ne.s32.totalorder %s97, %s98
    %p112 = scmp.eq.s32.totalorder %s15, 8
    %p113 = por %p111, %p112
    %p115 = scmp.ne.s32.totalorder %s98, %s114
    %p116 = scmp.eq.s32.totalorder %s15, 0
    %p117 = por %p115, %p116
    %s118 = ssub.s32 %s16, %s35
    %s119 = ssub.s32 %s17, %s31
    %s120 = sor.u32 %s118, %s119
    %p121 = scmp.eq.s32.totalorder %s120, 0
    %s123 = sadd.s32 %s122, 1
    %s124 = scalar_select %p121, %s122, %s123
    %p127 = pneg %p121
    %p128 = scmp.eq.s32.totalorder %s9, 8
    %p129 = por %p127, %p128
    %p130 = scmp.ne.s32.totalorder %s122, %s125
    %p131 = scmp.eq.s32.totalorder %s9, 0
    %p132 = por %p130, %p131
    %p133 = scmp.ne.s32.totalorder %s122, %s125
    %p134 = scmp.eq.s32.totalorder %s14, 8
    %p135 = por %p133, %p134
    %p136 = scmp.ne.s32.totalorder %s125, %s126
    %p137 = scmp.eq.s32.totalorder %s14, 0
    %p138 = por %p136, %p137
    %p139 = scmp.ne.s32.totalorder %s125, %s126
    %p140 = scmp.eq.s32.totalorder %s15, 8
    %p141 = por %p139, %p140
    %p143 = scmp.ne.s32.totalorder %s126, %s142
    %p144 = scmp.eq.s32.totalorder %s15, 0
    %p145 = por %p143, %p144
    %p146 = scmp.le.s32.totalorder 1, %s9
    %p147 = scmp.lt.s32.totalorder %s9, 10
    %p148 = pnand %p146, %p147
    %p149 = pneg %p148
    // Predicated region
    $region9: #{conv_bn_act.1} parent=5 // pred_check
      _
    $region10: #{conv_bn_act.1} parent=5 // pred_check_branch
      %151 = sbr.rel (%p148) target = $region12
    $region11: #{conv_bn_act.1} parent=5 // pred_region
      %s152 = ssub.s32 %s9, 1
      // Predicated region
      $region13: #{conv_bn_act.1} parent=11 // pred_check
        %p153 = pneg %p84
      $region14: #{conv_bn_act.1} parent=11 // pred_check_branch
        %155 = sbr.rel (%p153) target = $region16
      $region15: #{conv_bn_act.1} parent=11 // pred_region
        %s156 = smul.u32 16, %s21
        %p157 = scmp.lt.s32.totalorder %s156, 15
        %s158 = scalar_select %p157, %s156, 15
        %p159 = scmp.lt.s32.totalorder %s20, 0
        %s160 = scalar_select %p159, %s20, 0
        %s161 = sadd.s32 %s160, %s158
        %s162 = smul.addr %s161, 4
        %s163 = scalar_lea.vmem %s1, %s162
        %s164 = smul.u32 16, %s21
      $region16: #{conv_bn_act.1} parent=11 // pred_fallthru
        _
      // Predicated region
      $region17: #{conv_bn_act.1} parent=11 // pred_check
        %p165 = pneg %p110
      $region18: #{conv_bn_act.1} parent=11 // pred_check_branch
        %167 = sbr.rel (%p165) target = $region20
      $region19: #{conv_bn_act.1} parent=11 // pred_region
        %p168 = scmp.lt.s32.totalorder %s20, 0
        %s169 = scalar_select %p168, %s20, 0
        %s170 = scalar_lea.vmem %s2, %s169
      $region20: #{conv_bn_act.1} parent=11 // pred_fallthru
        _
    $region12: #{conv_bn_act.1} parent=5 // pred_fallthru
      _
    %p171 = scmp.lt.s32.totalorder %s9, 9
    // Predicated region
    $region21: #{conv_bn_act.1} parent=5 // pred_check
      %p172 = pneg %p171
    $region22: #{conv_bn_act.1} parent=5 // pred_check_branch
      %174 = sbr.rel (%p172) target = $region24
    $region23: #{conv_bn_act.1} parent=5 // pred_region
      // Predicated region
      $region25: #{conv_bn_act.1} parent=23 // pred_check
        %p175 = pneg %p50
      $region26: #{conv_bn_act.1} parent=23 // pred_check_branch
        %177 = sbr.rel (%p175) target = $region28
      $region27: #{conv_bn_act.1} parent=23 // pred_region
        %s178 = smul.u32 32, %s16
        %p179 = scmp.lt.s32.totalorder %s178, 287
        %s180 = scalar_select %p179, %s178, 287
        %p181 = scmp.lt.s32.totalorder %s18, 0
        %s182 = scalar_select %p181, %s18, 0
        %s183 = sadd.s32 %s182, %s180
        %s184 = smul.addr %s183, 4
        %s185 = scalar_lea.vmem %s0, %s184
        %s186 = smul.u32 32, %s16
      $region28: #{conv_bn_act.1} parent=23 // pred_fallthru
        _
    $region24: #{conv_bn_act.1} parent=5 // pred_fallthru
      _
    %p187 = scmp.le.s32.totalorder 1, %s9
    %p188 = scmp.lt.s32.totalorder %s9, 10
    %p189 = pnand %p187, %p188
    %p190 = pneg %p189
    // Predicated region
    $region29: #{conv_bn_act.1} parent=5 // pred_check
      _
    $region30: #{conv_bn_act.1} parent=5 // pred_check_branch
      %192 = sbr.rel (%p189) target = $region32
    $region31: #{conv_bn_act.1} parent=5 // pred_region
      %s193 = ssub.s32 %s9, 1
      %s194 = smul.u32 32, %s19
      %p195 = scmp.lt.s32.totalorder %s194, 287
      %s196 = scalar_select %p195, %s194, 287
      %p197 = scmp.lt.s32.totalorder %s21, 0
      %s198 = scalar_select %p197, %s21, 0
      %s199 = sadd.s32 %s198, %s196
      %s200 = smul.addr %s199, 4
      %s201 = scalar_lea.vmem %s0, %s200
      %p202 = pneg %p56
      %p203 = pneg %p53
      %s204 = smul.u32 16, %s21
      %p205 = scmp.lt.s32.totalorder %s204, 15
      %s206 = scalar_select %p205, %s204, 15
      %p207 = scmp.lt.s32.totalorder %s20, 0
      %s208 = scalar_select %p207, %s20, 0
      %s209 = sadd.s32 %s208, %s206
      %s210 = smul.addr %s209, 4
      %s211 = scalar_lea.vmem %s1, %s210
      %p212 = pneg %p84
      %p213 = pneg %p81
      %p214 = scmp.lt.s32.totalorder %s20, 0
      %s215 = scalar_select %p214, %s20, 0
      %s216 = scalar_lea.vmem %s2, %s215
      %p217 = pneg %p110
      %p218 = pneg %p107
      %p219 = pneg %p138
      %p220 = pneg %p135
      %s221 = smul.u32 32, %s19
      %p222 = scmp.lt.s32.totalorder %s221, 287
      %s223 = scalar_select %p222, %s221, 287
      %p224 = scmp.lt.s32.totalorder %s20, 0
      %s225 = scalar_select %p224, %s20, 0
      %s226 = sadd.s32 %s225, %s223
      %s227 = smul.addr %s226, 4
      %s228 = scalar_lea.vmem %s3, %s227
      %s229 = smul.u32 32, %s19
      %p230 = scmp.lt.s32.totalorder %s229, 287
      %s231 = scalar_select %p230, %s229, 287
      %p232 = scmp.lt.s32.totalorder %s21, 0
      %s233 = scalar_select %p232, %s21, 0
      %s234 = sadd.s32 %s233, %s231
      %s235 = smul.addr %s234, 4
      %s236 = scalar_lea.vmem %s0, %s235
      %s237 = smul.u32 32, %s19
      %s238 = smul.u32 16, %s21
      %p239 = scmp.lt.s32.totalorder %s238, 15
      %s240 = scalar_select %p239, %s238, 15
      %p241 = scmp.lt.s32.totalorder %s20, 0
      %s242 = scalar_select %p241, %s20, 0
      %s243 = sadd.s32 %s242, %s240
      %s244 = smul.addr %s243, 4
      %s245 = scalar_lea.vmem %s1, %s244
      %s246 = smul.u32 16, %s21
      %p247 = scmp.lt.s32.totalorder %s20, 0
      %s248 = scalar_select %p247, %s20, 0
      %s249 = scalar_lea.vmem %s2, %s248
      %s250 = smul.u32 32, %s19
      %p251 = scmp.lt.s32.totalorder %s250, 287
      %s252 = scalar_select %p251, %s250, 287
      %p253 = scmp.lt.s32.totalorder %s20, 0
      %s254 = scalar_select %p253, %s20, 0
      %s255 = sadd.s32 %s254, %s252
      %s256 = smul.addr %s255, 4
      %s257 = scalar_lea.vmem %s3, %s256
      %s258 = smul.u32 32, %s19
      %p260 = scmp.eq.s32.totalorder %s21, 0
      // Predicated region
      $region33: #{conv_bn_act.1} parent=31 // pred_check
        %p261 = pneg %p260
      $region34: #{conv_bn_act.1} parent=31 // pred_check_branch
        %263 = sbr.rel (%p261) target = $region36
      $region35: #{conv_bn_act.1} parent=31 // pred_region
        %264 = vst [vmem:[#allocation2] sm:$0xff] 0.0
        %265 = vst [vmem:[#allocation2 + $0x8] sm:$0xff] 0.0
        %266 = vst [vmem:[#allocation2 + $0x10] sm:$0xff] 0.0
        %267 = vst [vmem:[#allocation2 + $0x18] sm:$0xff] 0.0
        %268 = vst [vmem:[#allocation2 + $0x20] sm:$0xff] 0.0
        %269 = vst [vmem:[#allocation2 + $0x28] sm:$0xff] 0.0
        %270 = vst [vmem:[#allocation2 + $0x30] sm:$0xff] 0.0
        %271 = vst [vmem:[#allocation2 + $0x38] sm:$0xff] 0.0
        %272 = vst [vmem:[#allocation2 + $0x40] sm:$0xff] 0.0
        %273 = vst [vmem:[#allocation2 + $0x48] sm:$0xff] 0.0
        %274 = vst [vmem:[#allocation2 + $0x50] sm:$0xff] 0.0
        %275 = vst [vmem:[#allocation2 + $0x58] sm:$0xff] 0.0
        %276 = vst [vmem:[#allocation2 + $0x60] sm:$0xff] 0.0
        %277 = vst [vmem:[#allocation2 + $0x68] sm:$0xff] 0.0
        %278 = vst [vmem:[#allocation2 + $0x70] sm:$0xff] 0.0
        %279 = vst [vmem:[#allocation2 + $0x78] sm:$0xff] 0.0
        %280 = vst [vmem:[#allocation2 + $0x80] sm:$0xff] 0.0
        %281 = vst [vmem:[#allocation2 + $0x88] sm:$0xff] 0.0
        %282 = vst [vmem:[#allocation2 + $0x90] sm:$0xff] 0.0
        %283 = vst [vmem:[#allocation2 + $0x98] sm:$0xff] 0.0
        %284 = vst [vmem:[#allocation2 + $0xa0] sm:$0xff] 0.0
        %285 = vst [vmem:[#allocation2 + $0xa8] sm:$0xff] 0.0
        %286 = vst [vmem:[#allocation2 + $0xb0] sm:$0xff] 0.0
        %287 = vst [vmem:[#allocation2 + $0xb8] sm:$0xff] 0.0
        %288 = vst [vmem:[#allocation2 + $0xc0] sm:$0xff] 0.0
        %289 = vst [vmem:[#allocation2 + $0xc8] sm:$0xff] 0.0
        %290 = vst [vmem:[#allocation2 + $0xd0] sm:$0xff] 0.0
        %291 = vst [vmem:[#allocation2 + $0xd8] sm:$0xff] 0.0
        %292 = vst [vmem:[#allocation2 + $0xe0] sm:$0xff] 0.0
        %293 = vst [vmem:[#allocation2 + $0xe8] sm:$0xff] 0.0
        %294 = vst [vmem:[#allocation2 + $0xf0] sm:$0xff] 0.0
        %295 = vst [vmem:[#allocation2 + $0xf8] sm:$0xff] 0.0
      $region36: #{conv_bn_act.1} parent=31 // pred_fallthru
        _
      %v296 = vld [vmem:[#allocation2] sm:$0xff]
      %v297 = vld [vmem:[#allocation2 + $0x8] sm:$0xff]
      %v298 = vld [vmem:[#allocation2 + $0x10] sm:$0xff]
      %v299 = vld [vmem:[#allocation2 + $0x18] sm:$0xff]
      %v300 = vld [vmem:[#allocation2 + $0x20] sm:$0xff]
      %v301 = vld [vmem:[#allocation2 + $0x28] sm:$0xff]
      %v302 = vld [vmem:[#allocation2 + $0x30] sm:$0xff]
      %v303 = vld [vmem:[#allocation2 + $0x38] sm:$0xff]
      %v304 = vld [vmem:[#allocation2 + $0x40] sm:$0xff]
      %v305 = vld [vmem:[#allocation2 + $0x48] sm:$0xff]
      %v306 = vld [vmem:[#allocation2 + $0x50] sm:$0xff]
      %v307 = vld [vmem:[#allocation2 + $0x58] sm:$0xff]
      %v308 = vld [vmem:[#allocation2 + $0x60] sm:$0xff]
      %v309 = vld [vmem:[#allocation2 + $0x68] sm:$0xff]
      %v310 = vld [vmem:[#allocation2 + $0x70] sm:$0xff]
      %v311 = vld [vmem:[#allocation2 + $0x78] sm:$0xff]
      %v312 = vld [vmem:[#allocation2 + $0x80] sm:$0xff]
      %v313 = vld [vmem:[#allocation2 + $0x88] sm:$0xff]
      %v314 = vld [vmem:[#allocation2 + $0x90] sm:$0xff]
      %v315 = vld [vmem:[#allocation2 + $0x98] sm:$0xff]
      %v316 = vld [vmem:[#allocation2 + $0xa0] sm:$0xff]
      %v317 = vld [vmem:[#allocation2 + $0xa8] sm:$0xff]
      %v318 = vld [vmem:[#allocation2 + $0xb0] sm:$0xff]
      %v319 = vld [vmem:[#allocation2 + $0xb8] sm:$0xff]
      %v320 = vld [vmem:[#allocation2 + $0xc0] sm:$0xff]
      %v321 = vld [vmem:[#allocation2 + $0xc8] sm:$0xff]
      %v322 = vld [vmem:[#allocation2 + $0xd0] sm:$0xff]
      %v323 = vld [vmem:[#allocation2 + $0xd8] sm:$0xff]
      %v324 = vld [vmem:[#allocation2 + $0xe0] sm:$0xff]
      %v325 = vld [vmem:[#allocation2 + $0xe8] sm:$0xff]
      %v326 = vld [vmem:[#allocation2 + $0xf0] sm:$0xff]
      %v327 = vld [vmem:[#allocation2 + $0xf8] sm:$0xff]
      %v328 = vld [vmem:[%s236] sm:$0xf]
      %v329 = vld [vmem:[%s236 + $0x4] sm:$0xf]
      %v330 = vld [vmem:[%s236 + $0x8] sm:$0xf]
      %v331 = vld [vmem:[%s236 + $0xc] sm:$0xf]
      %v332 = vld [vmem:[%s236 + $0x10] sm:$0xf]
      %v333 = vld [vmem:[%s236 + $0x14] sm:$0xf]
      %v334 = vld [vmem:[%s236 + $0x18] sm:$0xf]
      %v335 = vld [vmem:[%s236 + $0x1c] sm:$0xf]
      %v336 = vld [vmem:[%s236 + $0x20] sm:$0xf]
      %v337 = vld [vmem:[%s236 + $0x24] sm:$0xf]
      %v338 = vld [vmem:[%s236 + $0x28] sm:$0xf]
      %v339 = vld [vmem:[%s236 + $0x2c] sm:$0xf]
      %v340 = vld [vmem:[%s236 + $0x30] sm:$0xf]
      %v341 = vld [vmem:[%s236 + $0x34] sm:$0xf]
      %v342 = vld [vmem:[%s236 + $0x38] sm:$0xf]
      %v343 = vld [vmem:[%s236 + $0x3c] sm:$0xf]
      %v344 = vld [vmem:[%s236 + $0x40] sm:$0xf]
      %v345 = vld [vmem:[%s236 + $0x44] sm:$0xf]
      %v346 = vld [vmem:[%s236 + $0x48] sm:$0xf]
      %v347 = vld [vmem:[%s236 + $0x4c] sm:$0xf]
      %v348 = vld [vmem:[%s236 + $0x50] sm:$0xf]
      %v349 = vld [vmem:[%s236 + $0x54] sm:$0xf]
      %v350 = vld [vmem:[%s236 + $0x58] sm:$0xf]
      %v351 = vld [vmem:[%s236 + $0x5c] sm:$0xf]
      %v352 = vld [vmem:[%s236 + $0x60] sm:$0xf]
      %v353 = vld [vmem:[%s236 + $0x64] sm:$0xf]
      %v354 = vld [vmem:[%s236 + $0x68] sm:$0xf]
      %v355 = vld [vmem:[%s236 + $0x6c] sm:$0xf]
      %v356 = vld [vmem:[%s236 + $0x70] sm:$0xf]
      %v357 = vld [vmem:[%s236 + $0x74] sm:$0xf]
      %v358 = vld [vmem:[%s236 + $0x78] sm:$0xf]
      %v359 = vld [vmem:[%s236 + $0x7c] sm:$0xf]
      %v360 = vld [vmem:[%s245] sm:$0xf]
      %v361 = vld [vmem:[%s245 + $0x4] sm:$0xf]
      %v362 = vld [vmem:[%s245 + $0x8] sm:$0xf]
      %v363 = vld [vmem:[%s245 + $0xc] sm:$0xf]
      %v364 = vld [vmem:[%s245 + $0x10] sm:$0xf]
      %v365 = vld [vmem:[%s245 + $0x14] sm:$0xf]
      %v366 = vld [vmem:[%s245 + $0x18] sm:$0xf]
      %v367 = vld [vmem:[%s245 + $0x1c] sm:$0xf]
      %v368 = vld [vmem:[%s245 + $0x20] sm:$0xf]
      %v369 = vld [vmem:[%s245 + $0x24] sm:$0xf]
      %v370 = vld [vmem:[%s245 + $0x28] sm:$0xf]
      %v371 = vld [vmem:[%s245 + $0x2c] sm:$0xf]
      %v372 = vld [vmem:[%s245 + $0x30] sm:$0xf]
      %v373 = vld [vmem:[%s245 + $0x34] sm:$0xf]
      %v374 = vld [vmem:[%s245 + $0x38] sm:$0xf]
      %v375 = vld [vmem:[%s245 + $0x3c] sm:$0xf]
      %v408 = vunpack.c.l.b16 %v328
      %v409 = vunpack.c.l.b16 %v329
      %v410 = vunpack.c.l.b16 %v330
      %v411 = vunpack.c.l.b16 %v331
      %v412 = vunpack.c.l.b16 %v332
      %v413 = vunpack.c.l.b16 %v333
      %v414 = vunpack.c.l.b16 %v334
      %v415 = vunpack.c.l.b16 %v335
      %v416 = vunpack.c.l.b16 %v336
      %v417 = vunpack.c.l.b16 %v337
      %v418 = vunpack.c.l.b16 %v338
      %v419 = vunpack.c.l.b16 %v339
      %v420 = vunpack.c.l.b16 %v340
      %v421 = vunpack.c.l.b16 %v341
      %v422 = vunpack.c.l.b16 %v342
      %v423 = vunpack.c.l.b16 %v343
      %v424 = vunpack.c.l.b16 %v344
      %v425 = vunpack.c.l.b16 %v345
      %v426 = vunpack.c.l.b16 %v346
      %v427 = vunpack.c.l.b16 %v347
      %v428 = vunpack.c.l.b16 %v348
      %v429 = vunpack.c.l.b16 %v349
      %v430 = vunpack.c.l.b16 %v350
      %v431 = vunpack.c.l.b16 %v351
      %v432 = vunpack.c.l.b16 %v352
      %v433 = vunpack.c.l.b16 %v353
      %v434 = vunpack.c.l.b16 %v354
      %v435 = vunpack.c.l.b16 %v355
      %v436 = vunpack.c.l.b16 %v356
      %v437 = vunpack.c.l.b16 %v357
      %v438 = vunpack.c.l.b16 %v358
      %v439 = vunpack.c.l.b16 %v359
      %v440 = vpack.c.b16 %v409, %v408
      %v441 = vpack.c.b16 %v411, %v410
      %v442 = vpack.c.b16 %v413, %v412
      %v443 = vpack.c.b16 %v415, %v414
      %v444 = vpack.c.b16 %v417, %v416
      %v445 = vpack.c.b16 %v419, %v418
      %v446 = vpack.c.b16 %v421, %v420
      %v447 = vpack.c.b16 %v423, %v422
      %v448 = vpack.c.b16 %v425, %v424
      %v449 = vpack.c.b16 %v427, %v426
      %v450 = vpack.c.b16 %v429, %v428
      %v451 = vpack.c.b16 %v431, %v430
      %v452 = vpack.c.b16 %v433, %v432
      %v453 = vpack.c.b16 %v435, %v434
      %v454 = vpack.c.b16 %v437, %v436
      %v455 = vpack.c.b16 %v439, %v438
      %v488 = vunpack.c.l.b16 %v360
      %v489 = vunpack.c.l.b16 %v361
      %v490 = vunpack.c.l.b16 %v362
      %v491 = vunpack.c.l.b16 %v363
      %v492 = vunpack.c.l.b16 %v364
      %v493 = vunpack.c.l.b16 %v365
      %v494 = vunpack.c.l.b16 %v366
      %v495 = vunpack.c.l.b16 %v367
      %v496 = vunpack.c.l.b16 %v368
      %v497 = vunpack.c.l.b16 %v369
      %v498 = vunpack.c.l.b16 %v370
      %v499 = vunpack.c.l.b16 %v371
      %v500 = vunpack.c.l.b16 %v372
      %v501 = vunpack.c.l.b16 %v373
      %v502 = vunpack.c.l.b16 %v374
      %v503 = vunpack.c.l.b16 %v375
      %v504 = vpack.c.b16 %v489, %v488
      %v505 = vpack.c.b16 %v491, %v490
      %v506 = vpack.c.b16 %v493, %v492
      %v507 = vpack.c.b16 %v495, %v494
      %v508 = vpack.c.b16 %v497, %v496
      %v509 = vpack.c.b16 %v499, %v498
      %v510 = vpack.c.b16 %v501, %v500
      %v511 = vpack.c.b16 %v503, %v502
      %520 = vmatprep.subr.bf16.mxu0 0
      %521 = vmatpush1.bf16.msra.mxu0 %v504
      %522 = vmatprep.subr.bf16.mxu0 0
      %523 = vmatpush1.bf16.msra.mxu0 %v505
      %524 = vmatprep.subr.bf16.mxu0 0
      %525 = vmatpush1.bf16.msra.mxu0 %v506
      %526 = vmatprep.subr.bf16.mxu0 0
      %527 = vmatpush1.bf16.msra.mxu0 %v507
      %528 = vmatprep.subr.bf16.mxu0 0
      %529 = vmatpush1.bf16.msra.mxu0 %v508
      %530 = vmatprep.subr.bf16.mxu0 0
      %531 = vmatpush1.bf16.msra.mxu0 %v509
      %532 = vmatprep.subr.bf16.mxu0 0
      %533 = vmatpush1.bf16.msra.mxu0 %v510
      %534 = vmatprep.subr.bf16.mxu0 0
      %535 = vmatpush1.bf16.msra.mxu0 %v511
      %536 = vmatprep.subr.bf16.mxu0 0
      %537 = vmatpush1.bf16.msra.mxu0 0
      %538 = vmatprep.subr.bf16.mxu0 0
      %539 = vmatpush1.bf16.msra.mxu0 0
      %540 = vmatprep.subr.bf16.mxu0 0
      %541 = vmatpush1.bf16.msra.mxu0 0
      %542 = vmatprep.subr.bf16.mxu0 0
      %543 = vmatpush1.bf16.msra.mxu0 0
      %544 = vmatprep.subr.bf16.mxu0 0
      %545 = vmatpush1.bf16.msra.mxu0 0
      %546 = vmatprep.subr.bf16.mxu0 0
      %547 = vmatpush1.bf16.msra.mxu0 0
      %548 = vmatprep.subr.bf16.mxu0 0
      %549 = vmatpush1.bf16.msra.mxu0 0
      %550 = vmatprep.subr.bf16.mxu0 0
      %551 = vmatpush1.bf16.msra.mxu0 0
      %552 = vmatprep.mubr.bf16.mxu0 0
      %553 = vmatmul.mubr.bf16.gmra.mrb[0].mxu0 %v440
      %v554 = vpop.f32.mrb[0].mxu0
      %v555 = vadd.f32 0.0, %v554
      %v556 = vpop.f32.mrb[0].mxu0
      %v557 = vpop.f32.mrb[0].mxu0
      %v558 = vadd.f32 0.0, %v557
      %v559 = vpop.f32.mrb[0].mxu0
      %560 = vmatprep.mubr.bf16.mxu0 0
      %561 = vmatmul.mubr.bf16.gmra.mrb[0].mxu0 %v441
      %v562 = vpop.f32.mrb[0].mxu0
      %v563 = vadd.f32 0.0, %v562
      %v564 = vpop.f32.mrb[0].mxu0
      %v565 = vpop.f32.mrb[0].mxu0
      %v566 = vadd.f32 0.0, %v565
      %v567 = vpop.f32.mrb[0].mxu0
      %568 = vmatprep.mubr.bf16.mxu0 0
      %569 = vmatmul.mubr.bf16.gmra.mrb[0].mxu0 %v442
      %v570 = vpop.f32.mrb[0].mxu0
      %v571 = vadd.f32 0.0, %v570
      %v572 = vpop.f32.mrb[0].mxu0
      %v573 = vpop.f32.mrb[0].mxu0
      %v574 = vadd.f32 0.0, %v573
      %v575 = vpop.f32.mrb[0].mxu0
      %576 = vmatprep.mubr.bf16.mxu0 0
      %577 = vmatmul.mubr.bf16.gmra.mrb[0].mxu0 %v443
      %v578 = vpop.f32.mrb[0].mxu0
      %v579 = vadd.f32 0.0, %v578
      %v580 = vpop.f32.mrb[0].mxu0
      %v581 = vpop.f32.mrb[0].mxu0
      %v582 = vadd.f32 0.0, %v581
      %v583 = vpop.f32.mrb[0].mxu0
      %584 = vmatprep.mubr.bf16.mxu0 0
      %585 = vmatmul.mubr.bf16.gmra.mrb[0].mxu0 %v444
      %v586 = vpop.f32.mrb[0].mxu0
      %v587 = vadd.f32 0.0, %v586
      %v588 = vpop.f32.mrb[0].mxu0
      %v589 = vpop.f32.mrb[0].mxu0
      %v590 = vadd.f32 0.0, %v589
      %v591 = vpop.f32.mrb[0].mxu0
      %592 = vmatprep.mubr.bf16.mxu0 0
      %593 = vmatmul.mubr.bf16.gmra.mrb[0].mxu0 %v445
      %v594 = vpop.f32.mrb[0].mxu0
      %v595 = vadd.f32 0.0, %v594
      %v596 = vpop.f32.mrb[0].mxu0
      %v597 = vpop.f32.mrb[0].mxu0
      %v598 = vadd.f32 0.0, %v597
      %v599 = vpop.f32.mrb[0].mxu0
      %600 = vmatprep.mubr.bf16.mxu0 0
      %601 = vmatmul.mubr.bf16.gmra.mrb[0].mxu0 %v446
      %v602 = vpop.f32.mrb[0].mxu0
      %v603 = vadd.f32 0.0, %v602
      %v604 = vpop.f32.mrb[0].mxu0
      %v605 = vpop.f32.mrb[0].mxu0
      %v606 = vadd.f32 0.0, %v605
      %v607 = vpop.f32.mrb[0].mxu0
      %608 = vmatprep.mubr.bf16.mxu0 0
      %609 = vmatmul.mubr.bf16.gmra.mrb[0].mxu0 %v447
      %v610 = vpop.f32.mrb[0].mxu0
      %v611 = vadd.f32 0.0, %v610
      %v612 = vpop.f32.mrb[0].mxu0
      %v613 = vpop.f32.mrb[0].mxu0
      %v614 = vadd.f32 0.0, %v613
      %v615 = vpop.f32.mrb[0].mxu0
      %616 = vmatprep.mubr.bf16.mxu0 0
      %617 = vmatmul.mubr.bf16.gmra.mrb[0].mxu0 %v448
      %v618 = vpop.f32.mrb[0].mxu0
      %v619 = vadd.f32 0.0, %v618
      %v620 = vpop.f32.mrb[0].mxu0
      %v621 = vpop.f32.mrb[0].mxu0
      %v622 = vadd.f32 0.0, %v621
      %v623 = vpop.f32.mrb[0].mxu0
      %624 = vmatprep.mubr.bf16.mxu0 0
      %625 = vmatmul.mubr.bf16.gmra.mrb[0].mxu0 %v449
      %v626 = vpop.f32.mrb[0].mxu0
      %v627 = vadd.f32 0.0, %v626
      %v628 = vpop.f32.mrb[0].mxu0
      %v629 = vpop.f32.mrb[0].mxu0
      %v630 = vadd.f32 0.0, %v629
      %v631 = vpop.f32.mrb[0].mxu0
      %632 = vmatprep.mubr.bf16.mxu0 0
      %633 = vmatmul.mubr.bf16.gmra.mrb[0].mxu0 %v450
      %v634 = vpop.f32.mrb[0].mxu0
      %v635 = vadd.f32 0.0, %v634
      %v636 = vpop.f32.mrb[0].mxu0
      %v637 = vpop.f32.mrb[0].mxu0
      %v638 = vadd.f32 0.0, %v637
      %v639 = vpop.f32.mrb[0].mxu0
      %640 = vmatprep.mubr.bf16.mxu0 0
      %641 = vmatmul.mubr.bf16.gmra.mrb[0].mxu0 %v451
      %v642 = vpop.f32.mrb[0].mxu0
      %v643 = vadd.f32 0.0, %v642
      %v644 = vpop.f32.mrb[0].mxu0
      %v645 = vpop.f32.mrb[0].mxu0
      %v646 = vadd.f32 0.0, %v645
      %v647 = vpop.f32.mrb[0].mxu0
      %648 = vmatprep.mubr.bf16.mxu0 0
      %649 = vmatmul.mubr.bf16.gmra.mrb[0].mxu0 %v452
      %v650 = vpop.f32.mrb[0].mxu0
      %v651 = vadd.f32 0.0, %v650
      %v652 = vpop.f32.mrb[0].mxu0
      %v653 = vpop.f32.mrb[0].mxu0
      %v654 = vadd.f32 0.0, %v653
      %v655 = vpop.f32.mrb[0].mxu0
      %656 = vmatprep.mubr.bf16.mxu0 0
      %657 = vmatmul.mubr.bf16.gmra.mrb[0].mxu0 %v453
      %v658 = vpop.f32.mrb[0].mxu0
      %v659 = vadd.f32 0.0, %v658
      %v660 = vpop.f32.mrb[0].mxu0
      %v661 = vpop.f32.mrb[0].mxu0
      %v662 = vadd.f32 0.0, %v661
      %v663 = vpop.f32.mrb[0].mxu0
      %664 = vmatprep.mubr.bf16.mxu0 0
      %665 = vmatmul.mubr.bf16.gmra.mrb[0].mxu0 %v454
      %v666 = vpop.f32.mrb[0].mxu0
      %v667 = vadd.f32 0.0, %v666
      %v668 = vpop.f32.mrb[0].mxu0
      %v669 = vpop.f32.mrb[0].mxu0
      %v670 = vadd.f32 0.0, %v669
      %v671 = vpop.f32.mrb[0].mxu0
      %672 = vmatprep.mubr.bf16.mxu0 0
      %673 = vmatmul.mubr.bf16.gmra.mrb[0].mxu0 %v455
      %v674 = vpop.f32.mrb[0].mxu0
      %v675 = vadd.f32 0.0, %v674
      %v676 = vpop.f32.mrb[0].mxu0
      %v677 = vpop.f32.mrb[0].mxu0
      %v678 = vadd.f32 0.0, %v677
      %v679 = vpop.f32.mrb[0].mxu0
      %680 = vdwg.mxu0
      %v681 = vadd.f32 %v296, %v555
      %v682 = vadd.f32 %v297, %v558
      %v683 = vadd.f32 %v298, %v563
      %v684 = vadd.f32 %v299, %v566
      %v685 = vadd.f32 %v300, %v571
      %v686 = vadd.f32 %v301, %v574
      %v687 = vadd.f32 %v302, %v579
      %v688 = vadd.f32 %v303, %v582
      %v689 = vadd.f32 %v304, %v587
      %v690 = vadd.f32 %v305, %v590
      %v691 = vadd.f32 %v306, %v595
      %v692 = vadd.f32 %v307, %v598
      %v693 = vadd.f32 %v308, %v603
      %v694 = vadd.f32 %v309, %v606
      %v695 = vadd.f32 %v310, %v611
      %v696 = vadd.f32 %v311, %v614
      %v697 = vadd.f32 %v312, %v619
      %v698 = vadd.f32 %v313, %v622
      %v699 = vadd.f32 %v314, %v627
      %v700 = vadd.f32 %v315, %v630
      %v701 = vadd.f32 %v316, %v635
      %v702 = vadd.f32 %v317, %v638
      %v703 = vadd.f32 %v318, %v643
      %v704 = vadd.f32 %v319, %v646
      %v705 = vadd.f32 %v320, %v651
      %v706 = vadd.f32 %v321, %v654
      %v707 = vadd.f32 %v322, %v659
      %v708 = vadd.f32 %v323, %v662
      %v709 = vadd.f32 %v324, %v667
      %v710 = vadd.f32 %v325, %v670
      %v711 = vadd.f32 %v326, %v675
      %v712 = vadd.f32 %v327, %v678
      %713 = vst [vmem:[#allocation2] sm:$0xff] %v681
      %714 = vst [vmem:[#allocation2 + $0x8] sm:$0xff] %v682
      %715 = vst [vmem:[#allocation2 + $0x10] sm:$0xff] %v683
      %716 = vst [vmem:[#allocation2 + $0x18] sm:$0xff] %v684
      %717 = vst [vmem:[#allocation2 + $0x20] sm:$0xff] %v685
      %718 = vst [vmem:[#allocation2 + $0x28] sm:$0xff] %v686
      %719 = vst [vmem:[#allocation2 + $0x30] sm:$0xff] %v687
      %720 = vst [vmem:[#allocation2 + $0x38] sm:$0xff] %v688
      %721 = vst [vmem:[#allocation2 + $0x40] sm:$0xff] %v689
      %722 = vst [vmem:[#allocation2 + $0x48] sm:$0xff] %v690
      %723 = vst [vmem:[#allocation2 + $0x50] sm:$0xff] %v691
      %724 = vst [vmem:[#allocation2 + $0x58] sm:$0xff] %v692
      %725 = vst [vmem:[#allocation2 + $0x60] sm:$0xff] %v693
      %726 = vst [vmem:[#allocation2 + $0x68] sm:$0xff] %v694
      %727 = vst [vmem:[#allocation2 + $0x70] sm:$0xff] %v695
      %728 = vst [vmem:[#allocation2 + $0x78] sm:$0xff] %v696
      %729 = vst [vmem:[#allocation2 + $0x80] sm:$0xff] %v697
      %730 = vst [vmem:[#allocation2 + $0x88] sm:$0xff] %v698
      %731 = vst [vmem:[#allocation2 + $0x90] sm:$0xff] %v699
      %732 = vst [vmem:[#allocation2 + $0x98] sm:$0xff] %v700
      %733 = vst [vmem:[#allocation2 + $0xa0] sm:$0xff] %v701
      %734 = vst [vmem:[#allocation2 + $0xa8] sm:$0xff] %v702
      %735 = vst [vmem:[#allocation2 + $0xb0] sm:$0xff] %v703
      %736 = vst [vmem:[#allocation2 + $0xb8] sm:$0xff] %v704
      %737 = vst [vmem:[#allocation2 + $0xc0] sm:$0xff] %v705
      %738 = vst [vmem:[#allocation2 + $0xc8] sm:$0xff] %v706
      %739 = vst [vmem:[#allocation2 + $0xd0] sm:$0xff] %v707
      %740 = vst [vmem:[#allocation2 + $0xd8] sm:$0xff] %v708
      %741 = vst [vmem:[#allocation2 + $0xe0] sm:$0xff] %v709
      %742 = vst [vmem:[#allocation2 + $0xe8] sm:$0xff] %v710
      %743 = vst [vmem:[#allocation2 + $0xf0] sm:$0xff] %v711
      %744 = vst [vmem:[#allocation2 + $0xf8] sm:$0xff] %v712
      // Predicated region
      $region37: #{conv_bn_act.1} parent=31 // pred_check
        %p745 = pneg %p260
      $region38: #{conv_bn_act.1} parent=31 // pred_check_branch
        %747 = sbr.rel (%p745) target = $region40
      $region39: #{conv_bn_act.1} parent=31 // pred_region
        %v748 = vld [vmem:[#allocation2] sm:$0xff]
        %v749 = vld [vmem:[#allocation2 + $0x8] sm:$0xff]
        %v750 = vld [vmem:[#allocation2 + $0x10] sm:$0xff]
        %v751 = vld [vmem:[#allocation2 + $0x18] sm:$0xff]
        %v752 = vld [vmem:[#allocation2 + $0x20] sm:$0xff]
        %v753 = vld [vmem:[#allocation2 + $0x28] sm:$0xff]
        %v754 = vld [vmem:[#allocation2 + $0x30] sm:$0xff]
        %v755 = vld [vmem:[#allocation2 + $0x38] sm:$0xff]
        %v756 = vld [vmem:[#allocation2 + $0x40] sm:$0xff]
        %v757 = vld [vmem:[#allocation2 + $0x48] sm:$0xff]
        %v758 = vld [vmem:[#allocation2 + $0x50] sm:$0xff]
        %v759 = vld [vmem:[#allocation2 + $0x58] sm:$0xff]
        %v760 = vld [vmem:[#allocation2 + $0x60] sm:$0xff]
        %v761 = vld [vmem:[#allocation2 + $0x68] sm:$0xff]
        %v762 = vld [vmem:[#allocation2 + $0x70] sm:$0xff]
        %v763 = vld [vmem:[#allocation2 + $0x78] sm:$0xff]
        %v764 = vld [vmem:[#allocation2 + $0x80] sm:$0xff]
        %v765 = vld [vmem:[#allocation2 + $0x88] sm:$0xff]
        %v766 = vld [vmem:[#allocation2 + $0x90] sm:$0xff]
        %v767 = vld [vmem:[#allocation2 + $0x98] sm:$0xff]
        %v768 = vld [vmem:[#allocation2 + $0xa0] sm:$0xff]
        %v769 = vld [vmem:[#allocation2 + $0xa8] sm:$0xff]
        %v770 = vld [vmem:[#allocation2 + $0xb0] sm:$0xff]
        %v771 = vld [vmem:[#allocation2 + $0xb8] sm:$0xff]
        %v772 = vld [vmem:[#allocation2 + $0xc0] sm:$0xff]
        %v773 = vld [vmem:[#allocation2 + $0xc8] sm:$0xff]
        %v774 = vld [vmem:[#allocation2 + $0xd0] sm:$0xff]
        %v775 = vld [vmem:[#allocation2 + $0xd8] sm:$0xff]
        %v776 = vld [vmem:[#allocation2 + $0xe0] sm:$0xff]
        %v777 = vld [vmem:[#allocation2 + $0xe8] sm:$0xff]
        %v778 = vld [vmem:[#allocation2 + $0xf0] sm:$0xff]
        %v779 = vld [vmem:[#allocation2 + $0xf8] sm:$0xff]
        %v780 = vld [vmem:[%s249] sm:$0x1]
        %v782 = vlaneseq
        %v783 = vshrl.u32 %v782, 7
        %v784 = vsub.s32 0, %v783
        %v785 = vrot.slane %v780, %v784
        %v787 = vadd.f32 %v748, %v785
        %v788 = vadd.f32 %v749, %v785
        %v789 = vadd.f32 %v750, %v785
        %v790 = vadd.f32 %v751, %v785
        %v791 = vadd.f32 %v752, %v785
        %v792 = vadd.f32 %v753, %v785
        %v793 = vadd.f32 %v754, %v785
        %v794 = vadd.f32 %v755, %v785
        %v795 = vadd.f32 %v756, %v785
        %v796 = vadd.f32 %v757, %v785
        %v797 = vadd.f32 %v758, %v785
        %v798 = vadd.f32 %v759, %v785
        %v799 = vadd.f32 %v760, %v785
        %v800 = vadd.f32 %v761, %v785
        %v801 = vadd.f32 %v762, %v785
        %v802 = vadd.f32 %v763, %v785
        %v803 = vadd.f32 %v764, %v785
        %v804 = vadd.f32 %v765, %v785
        %v805 = vadd.f32 %v766, %v785
        %v806 = vadd.f32 %v767, %v785
        %v807 = vadd.f32 %v768, %v785
        %v808 = vadd.f32 %v769, %v785
        %v809 = vadd.f32 %v770, %v785
        %v810 = vadd.f32 %v771, %v785
        %v811 = vadd.f32 %v772, %v785
        %v812 = vadd.f32 %v773, %v785
        %v813 = vadd.f32 %v774, %v785
        %v814 = vadd.f32 %v775, %v785
        %v815 = vadd.f32 %v776, %v785
        %v816 = vadd.f32 %v777, %v785
        %v817 = vadd.f32 %v778, %v785
        %v818 = vadd.f32 %v779, %v785
        %v819 = vmax.f32 %v787, 0.0
        %v820 = vmax.f32 %v788, 0.0
        %v821 = vmax.f32 %v789, 0.0
        %v822 = vmax.f32 %v790, 0.0
        %v823 = vmax.f32 %v791, 0.0
        %v824 = vmax.f32 %v792, 0.0
        %v825 = vmax.f32 %v793, 0.0
        %v826 = vmax.f32 %v794, 0.0
        %v827 = vmax.f32 %v795, 0.0
        %v828 = vmax.f32 %v796, 0.0
        %v829 = vmax.f32 %v797, 0.0
        %v830 = vmax.f32 %v798, 0.0
        %v831 = vmax.f32 %v799, 0.0
        %v832 = vmax.f32 %v800, 0.0
        %v833 = vmax.f32 %v801, 0.0
        %v834 = vmax.f32 %v802, 0.0
        %v835 = vmax.f32 %v803, 0.0
        %v836 = vmax.f32 %v804, 0.0
        %v837 = vmax.f32 %v805, 0.0
        %v838 = vmax.f32 %v806, 0.0
        %v839 = vmax.f32 %v807, 0.0
        %v840 = vmax.f32 %v808, 0.0
        %v841 = vmax.f32 %v809, 0.0
        %v842 = vmax.f32 %v810, 0.0
        %v843 = vmax.f32 %v811, 0.0
        %v844 = vmax.f32 %v812, 0.0
        %v845 = vmax.f32 %v813, 0.0
        %v846 = vmax.f32 %v814, 0.0
        %v847 = vmax.f32 %v815, 0.0
        %v848 = vmax.f32 %v816, 0.0
        %v849 = vmax.f32 %v817, 0.0
        %v850 = vmax.f32 %v818, 0.0
        %v851 = vpack.c.bf16 %v820, %v819
        %v852 = vpack.c.bf16 %v822, %v821
        %v853 = vpack.c.bf16 %v824, %v823
        %v854 = vpack.c.bf16 %v826, %v825
        %v855 = vpack.c.bf16 %v828, %v827
        %v856 = vpack.c.bf16 %v830, %v829
        %v857 = vpack.c.bf16 %v832, %v831
        %v858 = vpack.c.bf16 %v834, %v833
        %v859 = vpack.c.bf16 %v836, %v835
        %v860 = vpack.c.bf16 %v838, %v837
        %v861 = vpack.c.bf16 %v840, %v839
        %v862 = vpack.c.bf16 %v842, %v841
        %v863 = vpack.c.bf16 %v844, %v843
        %v864 = vpack.c.bf16 %v846, %v845
        %v865 = vpack.c.bf16 %v848, %v847
        %v866 = vpack.c.bf16 %v850, %v849
        %v883 = vunpack.c.l.b16 %v851
        %v884 = vunpack.c.h.b16 %v851
        %v885 = vunpack.c.l.b16 %v852
        %v886 = vunpack.c.h.b16 %v852
        %v887 = vunpack.c.l.b16 %v853
        %v888 = vunpack.c.h.b16 %v853
        %v889 = vunpack.c.l.b16 %v854
        %v890 = vunpack.c.h.b16 %v854
        %v891 = vunpack.c.l.b16 %v855
        %v892 = vunpack.c.h.b16 %v855
        %v893 = vunpack.c.l.b16 %v856
        %v894 = vunpack.c.h.b16 %v856
        %v895 = vunpack.c.l.b16 %v857
        %v896 = vunpack.c.h.b16 %v857
        %v897 = vunpack.c.l.b16 %v858
        %v898 = vunpack.c.h.b16 %v858
        %v899 = vunpack.c.l.b16 %v859
        %v900 = vunpack.c.h.b16 %v859
        %v901 = vunpack.c.l.b16 %v860
        %v902 = vunpack.c.h.b16 %v860
        %v903 = vunpack.c.l.b16 %v861
        %v904 = vunpack.c.h.b16 %v861
        %v905 = vunpack.c.l.b16 %v862
        %v906 = vunpack.c.h.b16 %v862
        %v907 = vunpack.c.l.b16 %v863
        %v908 = vunpack.c.h.b16 %v863
        %v909 = vunpack.c.l.b16 %v864
        %v910 = vunpack.c.h.b16 %v864
        %v911 = vunpack.c.l.b16 %v865
        %v912 = vunpack.c.h.b16 %v865
        %v913 = vunpack.c.l.b16 %v866
        %v914 = vunpack.c.h.b16 %v866
        %v915 = vpack.c.b16 %v883, %v883
        %v916 = vpack.c.b16 %v884, %v884
        %v917 = vpack.c.b16 %v885, %v885
        %v918 = vpack.c.b16 %v886, %v886
        %v919 = vpack.c.b16 %v887, %v887
        %v920 = vpack.c.b16 %v888, %v888
        %v921 = vpack.c.b16 %v889, %v889
        %v922 = vpack.c.b16 %v890, %v890
        %v923 = vpack.c.b16 %v891, %v891
        %v924 = vpack.c.b16 %v892, %v892
        %v925 = vpack.c.b16 %v893, %v893
        %v926 = vpack.c.b16 %v894, %v894
        %v927 = vpack.c.b16 %v895, %v895
        %v928 = vpack.c.b16 %v896, %v896
        %v929 = vpack.c.b16 %v897, %v897
        %v930 = vpack.c.b16 %v898, %v898
        %v931 = vpack.c.b16 %v899, %v899
        %v932 = vpack.c.b16 %v900, %v900
        %v933 = vpack.c.b16 %v901, %v901
        %v934 = vpack.c.b16 %v902, %v902
        %v935 = vpack.c.b16 %v903, %v903
        %v936 = vpack.c.b16 %v904, %v904
        %v937 = vpack.c.b16 %v905, %v905
        %v938 = vpack.c.b16 %v906, %v906
        %v939 = vpack.c.b16 %v907, %v907
        %v940 = vpack.c.b16 %v908, %v908
        %v941 = vpack.c.b16 %v909, %v909
        %v942 = vpack.c.b16 %v910, %v910
        %v943 = vpack.c.b16 %v911, %v911
        %v944 = vpack.c.b16 %v912, %v912
        %v945 = vpack.c.b16 %v913, %v913
        %v946 = vpack.c.b16 %v914, %v914
        %979 = vst [vmem:[%s257] sm:$0xf] %v915
        %980 = vst [vmem:[%s257 + $0x4] sm:$0xf] %v916
        %981 = vst [vmem:[%s257 + $0x8] sm:$0xf] %v917
        %982 = vst [vmem:[%s257 + $0xc] sm:$0xf] %v918
        %983 = vst [vmem:[%s257 + $0x10] sm:$0xf] %v919
        %984 = vst [vmem:[%s257 + $0x14] sm:$0xf] %v920
        %985 = vst [vmem:[%s257 + $0x18] sm:$0xf] %v921
        %986 = vst [vmem:[%s257 + $0x1c] sm:$0xf] %v922
        %987 = vst [vmem:[%s257 + $0x20] sm:$0xf] %v923
        %988 = vst [vmem:[%s257 + $0x24] sm:$0xf] %v924
        %989 = vst [vmem:[%s257 + $0x28] sm:$0xf] %v925
        %990 = vst [vmem:[%s257 + $0x2c] sm:$0xf] %v926
        %991 = vst [vmem:[%s257 + $0x30] sm:$0xf] %v927
        %992 = vst [vmem:[%s257 + $0x34] sm:$0xf] %v928
        %993 = vst [vmem:[%s257 + $0x38] sm:$0xf] %v929
        %994 = vst [vmem:[%s257 + $0x3c] sm:$0xf] %v930
        %995 = vst [vmem:[%s257 + $0x40] sm:$0xf] %v931
        %996 = vst [vmem:[%s257 + $0x44] sm:$0xf] %v932
        %997 = vst [vmem:[%s257 + $0x48] sm:$0xf] %v933
        %998 = vst [vmem:[%s257 + $0x4c] sm:$0xf] %v934
        %999 = vst [vmem:[%s257 + $0x50] sm:$0xf] %v935
        %1000 = vst [vmem:[%s257 + $0x54] sm:$0xf] %v936
        %1001 = vst [vmem:[%s257 + $0x58] sm:$0xf] %v937
        %1002 = vst [vmem:[%s257 + $0x5c] sm:$0xf] %v938
        %1003 = vst [vmem:[%s257 + $0x60] sm:$0xf] %v939
        %1004 = vst [vmem:[%s257 + $0x64] sm:$0xf] %v940
        %1005 = vst [vmem:[%s257 + $0x68] sm:$0xf] %v941
        %1006 = vst [vmem:[%s257 + $0x6c] sm:$0xf] %v942
        %1007 = vst [vmem:[%s257 + $0x70] sm:$0xf] %v943
        %1008 = vst [vmem:[%s257 + $0x74] sm:$0xf] %v944
        %1009 = vst [vmem:[%s257 + $0x78] sm:$0xf] %v945
        %1010 = vst [vmem:[%s257 + $0x7c] sm:$0xf] %v946
      $region40: #{conv_bn_act.1} parent=31 // pred_fallthru
        _
      %s1011 = smul.u32 32, %s19
      %p1012 = scmp.lt.s32.totalorder %s1011, 287
      %s1013 = scalar_select %p1012, %s1011, 287
      %p1014 = scmp.lt.s32.totalorder %s20, 0
      %s1015 = scalar_select %p1014, %s20, 0
      %s1016 = sadd.s32 %s1015, %s1013
      %s1017 = smul.addr %s1016, 4
      %s1018 = scalar_lea.vmem %s3, %s1017
      // Predicated region
      $region41: #{conv_bn_act.1} parent=31 // pred_check
        %p1019 = pneg %p135
      $region42: #{conv_bn_act.1} parent=31 // pred_check_branch
        %1021 = sbr.rel (%p1019) target = $region44
      $region43: #{conv_bn_act.1} parent=31 // pred_region
        %s1022 = smul.u32 32, %s19
      $region44: #{conv_bn_act.1} parent=31 // pred_fallthru
        _
    $region32: #{conv_bn_act.1} parent=5 // pred_fallthru
      _
    %p1023 = scmp.le.s32.totalorder 2, %s9
    // Predicated region
    $region45: #{conv_bn_act.1} parent=5 // pred_check
      %p1024 = pneg %p1023
    $region46: #{conv_bn_act.1} parent=5 // pred_check_branch
      %1026 = sbr.rel (%p1024) target = $region48
    $region47: #{conv_bn_act.1} parent=5 // pred_region
      %s1027 = ssub.s32 %s9, 2
      // Predicated region
      $region49: #{conv_bn_act.1} parent=47 // pred_check
        %p1028 = pneg %p141
      $region50: #{conv_bn_act.1} parent=47 // pred_check_branch
        %1030 = sbr.rel (%p1028) target = $region52
      $region51: #{conv_bn_act.1} parent=47 // pred_region
        %s1031 = smul.u32 32, %s22
        %p1032 = scmp.lt.s32.totalorder %s1031, 287
        %s1033 = scalar_select %p1032, %s1031, 287
        %p1034 = scmp.lt.s32.totalorder %s23, 0
        %s1035 = scalar_select %p1034, %s23, 0
        %s1036 = sadd.s32 %s1035, %s1033
        %s1037 = smul.addr %s1036, 4
        %s1038 = scalar_lea.vmem %s3, %s1037
      $region52: #{conv_bn_act.1} parent=47 // pred_fallthru
        _
    $region48: #{conv_bn_act.1} parent=5 // pred_fallthru
      _
  $region6: #{conv_bn_act.1} parent=0 // loop_footer
    %s13 = sadd.s32 1, %s9
  $region7: #{conv_bn_act.1} parent=0 // loop_footer_branch
    %8 = sbr.rel target = $region3
  $region8: #{conv_bn_act.1} parent=0 // loop_exit
    _

</llo_original>
